<compile_context>
chip_gen: v7x
topology: tpu7x:2x2x1
jax: 0.10.0
libtpu: 0.0.40
codegen_flags: <defaults>
</compile_context>

<pallas_src>
import functools

import jax
import jax.numpy as jnp
from jax import lax
from jax.experimental import pallas as pl
from jax.experimental.pallas import tpu as pltpu


def _cdiv(a, b):
    return (a + b - 1) // b


def _cbow_kernel(x_ref,       # VMEM [1, E]        context vector (f32)
                 w_ref,       # VMEM [TV, E]       streamed tile of projection weight
                 logits_ref,  # VMEM [1, TV]       per-tile raw logits (streamed out)
                 lse_ref,     # VMEM [1, 1, 128]   per-tile logsumexp (broadcast)
                 *, vocab, tv, need_mask):
    v = pl.program_id(0)

    # [1,E] x [TV,E]^T -> [1,TV] on the MXU (contract E of both; no transpose in VMEM).
    xv = x_ref[...].astype(w_ref.dtype)
    logits = lax.dot_general(
        xv, w_ref[...],
        dimension_numbers=(((1,), (1,)), ((), ())),
        preferred_element_type=jnp.float32)

    # Mask vocab padding (only compiled in when V was padded up to a multiple of tv).
    if need_mask:
        col = v * tv + lax.broadcasted_iota(jnp.int32, logits.shape, 1)
        logits = jnp.where(col < vocab, logits, -jnp.inf)

    # Stream raw logits for this tile straight to HBM (lane-dense TV block).
    logits_ref[...] = logits

    # Per-tile logsumexp statistic; global reduction happens in the wrapper, so there
    # is no carried state across the vocab grid axis (-> "parallel" semantics).
    m_tile = jnp.max(logits, axis=1, keepdims=True)                     # (1, 1)
    l_tile = jnp.sum(jnp.exp(logits - m_tile), axis=1, keepdims=True)   # (1, 1)
    lse_tile = m_tile + jnp.log(l_tile)                                 # (1, 1)
    lse_ref[...] = jnp.broadcast_to(lse_tile[:, :, None], lse_ref.shape)


def prepare_cbow_projection(out_weights, *, tv=4096, w_dtype=jnp.float32):
    """One-time weight prep (hoisted out of the per-call path).

    Pads V up to a multiple of the vocab tile and casts once.  tv default gives
    ~1-2 MB tiles for E=128; on v7x, tv=8192 (2-4 MB tiles) is a good sweep point.
    Returns (w_padded, vocab, tv).
    """
    V, E = out_weights.shape
    tv = max(128, (int(tv) // 128) * 128)          # lane-dense output tiles
    tv = min(tv, _cdiv(V, 128) * 128)              # avoid padding far past small vocabs
    v_pad = _cdiv(V, tv) * tv
    w = jnp.asarray(out_weights, dtype=w_dtype)
    if v_pad != V:
        w = jnp.pad(w, ((0, v_pad - V), (0, 0)))   # padded rows masked to -inf in-kernel
    return w, V, tv


@functools.partial(jax.jit, static_argnames=("window_size", "vocab", "tv"))
def cbow_forward(ids, embedding, w_padded, *, window_size, vocab, tv):
    """ids: [C] int, embedding: [V,E] f32, w_padded: [V_pad,E] (from prepare) -> [1,V] log-probs."""
    v_pad, E = w_padded.shape
    assert v_pad % tv == 0
    nv = v_pad // tv
    need_mask = (v_pad != vocab)

    # Tiny C-row gather + scale in the wrapper (negligible HBM traffic for XLA).
    x = jnp.sum(embedding[ids].astype(jnp.float32), axis=0, keepdims=True)
    x = x * (1.0 / (2.0 * window_size))            # (1, E)

    kernel = functools.partial(_cbow_kernel, vocab=vocab, tv=tv, need_mask=need_mask)

    w_item = w_padded.dtype.itemsize
    tile_bytes = tv * E * w_item
    # double-buffered W tile + double-buffered streamed outputs + x; leave headroom.
    vmem_est = 2 * tile_bytes + 2 * tv * 4 + 2 * 128 * 4 + 2 * E * 4
    vmem_limit = int(min(max(2 * vmem_est, 32 << 20), 56 << 20))

    logits, lse_tiles = pl.pallas_call(
        kernel,
        out_shape=(jax.ShapeDtypeStruct((1, v_pad), jnp.float32),
                   jax.ShapeDtypeStruct((nv, 1, 128), jnp.float32)),
        grid_spec=pltpu.PrefetchScalarGridSpec(
            num_scalar_prefetch=0,
            grid=(nv,),
            in_specs=[
                pl.BlockSpec((1, E), lambda v: (0, 0)),     # x: tiny, re-fetched per tile
                pl.BlockSpec((tv, E), lambda v: (v, 0)),    # W streamed in >=1 MB tiles
            ],
            out_specs=(
                pl.BlockSpec((1, tv), lambda v: (0, v)),        # streamed lane-dense logits
                pl.BlockSpec((1, 1, 128), lambda v: (v, 0, 0)),  # per-tile lse
            ),
        ),
        compiler_params=pltpu.CompilerParams(
            dimension_semantics=("parallel",),      # no carry -> megacore-splittable on v7x
            vmem_limit_bytes=vmem_limit),
        cost_estimate=pl.CostEstimate(
            flops=2 * v_pad * E,
            transcendentals=v_pad,
            bytes_accessed=v_pad * E * w_item + v_pad * 4 + E * 4 + nv * 128 * 4),
    )(x, w_padded)

    # Global log-softmax: reduce per-tile stats (nv scalars) and subtract in the wrapper.
    lse = jax.nn.logsumexp(lse_tiles[:, 0, 0])
    return logits[:, :vocab] - lse


def cbow_reference(ids, embedding, out_weights, window_size):
    """Pure-JAX reference of the PyTorch forward."""
    summed = jnp.sum(embedding[ids], axis=0, keepdims=True)   # sum(emb(input)).view(1,-1)
    x = summed / (2.0 * window_size)
    logits = x @ out_weights.T
    return jax.nn.log_softmax(logits, axis=1)


if __name__ == "__main__":
    # Small, module-consistent shapes; vocab deliberately not a multiple of 128 to
    # exercise the padding/mask path.
    vocab = 1000
    embedding_size = 128
    window_size = 2
    context_len = 2 * window_size                  # CBoW context indices

    key = jax.random.PRNGKey(0)
    k_emb, k_w, k_ids = jax.random.split(key, 3)

    embedding = jax.random.normal(k_emb, (vocab, embedding_size), dtype=jnp.float32)
    bound = 1.0 / (embedding_size ** 0.5)
    out_weights = jax.random.uniform(
        k_w, (vocab, embedding_size), minval=-bound, maxval=bound, dtype=jnp.float32)
    ids = jax.random.randint(k_ids, (context_len,), 0, vocab, dtype=jnp.int32)

    ref = cbow_reference(ids, embedding, out_weights, window_size)

    # 1) Default config (tile clamps to the full small vocab; single-tile grid + tail mask).
    w1, V1, tv1 = prepare_cbow_projection(out_weights)
    out1 = jax.block_until_ready(
        cbow_forward(ids, embedding, w1, window_size=window_size, vocab=V1, tv=tv1))
    assert out1.shape == (1, vocab)
    assert jnp.allclose(out1, ref, atol=1e-4, rtol=1e-4), "f32 (default tv) mismatch"

    # 2) Multi-tile config: exercises the streamed grid (nv > 1), parallel vocab axis,
    #    per-tile lse reduction and tail masking.
    w2, V2, tv2 = prepare_cbow_projection(out_weights, tv=256)
    out2 = jax.block_until_ready(
        cbow_forward(ids, embedding, w2, window_size=window_size, vocab=V2, tv=tv2))
    assert jnp.allclose(out2, ref, atol=1e-4, rtol=1e-4), "f32 (multi-tile) mismatch"

    # 3) Optional bf16 W stream (halves HBM traffic for the dominant operand);
    #    validated against the f32 reference at a looser tolerance.
    w3, V3, tv3 = prepare_cbow_projection(out_weights, tv=256, w_dtype=jnp.bfloat16)
    out3 = jax.block_until_ready(
        cbow_forward(ids, embedding, w3, window_size=window_size, vocab=V3, tv=tv3))
    assert jnp.allclose(out3, ref, atol=5e-2, rtol=5e-2), "bf16 mismatch"

    print("KERNEL_OK")
</pallas_src>

<mosaic_0001>
module attributes {stable_mosaic.version = 11 : i64} {
  func.func @_cbow_kernel(%arg0: i32, %arg1: memref<1x128xf32, #tpu.memory_space<vmem>>, %arg2: memref<1024x128xf32, #tpu.memory_space<vmem>>, %arg3: memref<1x1024xf32, #tpu.memory_space<vmem>>, %arg4: memref<1x1x128xf32, #tpu.memory_space<vmem>>) attributes {dimension_semantics = [#tpu.dimension_semantics<parallel>], iteration_bounds = array<i64: 1>, scalar_prefetch = 0 : i64, scratch_operands = 0 : i64, tpu.core_type = #tpu.core_type<tc>, window_params = [{pipeline_mode = #tpu.pipeline_mode<synchronous>, transform_indices = @transform_0, window_bounds = array<i64: 1, 128>}, {transform_indices = @transform_1, window_bounds = array<i64: 1024, 128>}, {transform_indices = @transform_2, window_bounds = array<i64: 1, 1024>}, {transform_indices = @transform_3, window_bounds = array<i64: 1, 1, 128>}]} {
    %c0 = arith.constant 0 : index
    %c0_0 = arith.constant 0 : index
    %0 = vector.load %arg1[%c0, %c0_0] : memref<1x128xf32, #tpu.memory_space<vmem>>, vector<1x128xf32>
    %c0_1 = arith.constant 0 : index
    %c0_2 = arith.constant 0 : index
    %1 = vector.load %arg2[%c0_1, %c0_2] : memref<1024x128xf32, #tpu.memory_space<vmem>>, vector<1024x128xf32>
    %cst = arith.constant dense<0.000000e+00> : vector<1x1024xf32>
    %2 = tpu.matmul %0, %1, %cst {dimension_numbers = #tpu.dot_dimension_numbers<[1], [1], [0], [0], [0, 0, 1, 0], [], []>} : vector<1x128xf32>, vector<1024x128xf32>, vector<1x1024xf32> -> vector<1x1024xf32>
    %c1024_i32 = arith.constant 1024 : i32
    %3 = arith.muli %arg0, %c1024_i32 : i32
    %4 = tpu.iota {dimensions = array<i32: 1>} : vector<1x1024xi32>
    %5 = vector.broadcast %3 : i32 to vector<1x1024xi32>
    %6 = arith.addi %5, %4 : vector<1x1024xi32>
    %c1000_i32 = arith.constant 1000 : i32
    %7 = vector.broadcast %c1000_i32 : i32 to vector<1x1024xi32>
    %8 = arith.cmpi slt, %6, %7 : vector<1x1024xi32>
    %cst_3 = arith.constant 0xFF800000 : f32
    %9 = vector.broadcast %cst_3 : f32 to vector<1x1024xf32>
    %10 = arith.select %8, %2, %9 : vector<1x1024xi1>, vector<1x1024xf32>
    %c0_4 = arith.constant 0 : index
    %c0_5 = arith.constant 0 : index
    %11 = vector.load %arg3[%c0_4, %c0_5] : memref<1x1024xf32, #tpu.memory_space<vmem>>, vector<1x1024xf32>
    tpu.vector_store %arg3[%c0_4, %c0_5], %10 {strides = array<i32>} : memref<1x1024xf32, #tpu.memory_space<vmem>>, vector<1x1024xf32>,
    %cst_6 = arith.constant dense<0xFF800000> : vector<1xf32>
    %12 = vector.multi_reduction <maximumf>, %10, %cst_6 [1] : vector<1x1024xf32> to vector<1xf32>
    %13 = vector.shape_cast %12 : vector<1xf32> to vector<1x1xf32>
    %14 = vector.broadcast %13 : vector<1x1xf32> to vector<1x1024xf32>
    %15 = arith.subf %10, %14 : vector<1x1024xf32>
    %16 = math.exp %15 : vector<1x1024xf32>
    %cst_7 = arith.constant dense<0.000000e+00> : vector<1xf32>
    %17 = vector.multi_reduction <add>, %16, %cst_7 [1] : vector<1x1024xf32> to vector<1xf32>
    %18 = vector.shape_cast %17 : vector<1xf32> to vector<1x1xf32>
    %19 = math.log %18 : vector<1x1xf32>
    %20 = arith.addf %13, %19 : vector<1x1xf32>
    %21 = vector.shape_cast %20 : vector<1x1xf32> to vector<1x1x1xf32>
    %22 = vector.shape_cast %21 : vector<1x1x1xf32> to vector<1x1x1xf32>
    %23 = vector.broadcast %22 : vector<1x1x1xf32> to vector<1x1x128xf32>
    %c0_8 = arith.constant 0 : index
    %c0_9 = arith.constant 0 : index
    %c0_10 = arith.constant 0 : index
    %24 = vector.load %arg4[%c0_8, %c0_9, %c0_10] : memref<1x1x128xf32, #tpu.memory_space<vmem>>, vector<1x1x128xf32>
    tpu.vector_store %arg4[%c0_8, %c0_9, %c0_10], %23 {strides = array<i32>} : memref<1x1x128xf32, #tpu.memory_space<vmem>>, vector<1x1x128xf32>,
    return
  }
  func.func @transform_0(%arg0: i32) -> (i32, i32) {
    %c0_i32 = arith.constant 0 : i32
    %c0_i32_0 = arith.constant 0 : i32
    %c0_i32_1 = arith.constant 0 : i32
    return %c0_i32, %c0_i32_0 : i32, i32
  }
  func.func @transform_1(%arg0: i32) -> (i32, i32) {
    %c0_i32 = arith.constant 0 : i32
    %c0_i32_0 = arith.constant 0 : i32
    return %arg0, %c0_i32 : i32, i32
  }
  func.func @transform_2(%arg0: i32) -> (i32, i32) {
    %c0_i32 = arith.constant 0 : i32
    %c0_i32_0 = arith.constant 0 : i32
    return %c0_i32, %arg0 : i32, i32
  }
  func.func @transform_3(%arg0: i32) -> (i32, i32, i32) {
    %c0_i32 = arith.constant 0 : i32
    %c0_i32_0 = arith.constant 0 : i32
    %c0_i32_1 = arith.constant 0 : i32
    return %arg0, %c0_i32, %c0_i32_0 : i32, i32, i32
  }
}

</mosaic_0001>

<llo_original>
// kernel: cbow_forward.1
$region0: #{cbow_forward.1}
  #allocation0 [shape = 'u32[]', space=smem, size = 0x4, offset = 0x4, fixed_abs, tag = 'smem constant byte address 0x4 - core index']
  #allocation1 [shape = 'u32[144,128]{1,0:T(1,128)}', space=vmem, size = 0x12000, scoped, tag = 'internal scratch']
  %s0 = inlined_call_operand.vmem [shape: f32[1,128], index: 0, kind: input, shape index: {}]
  %s1 = inlined_call_operand.hbm [shape: f32[1024,128], index: 1, kind: input, shape index: {}]
  %s2 = inlined_call_operand.vmem [shape: f32[1,1024], index: 2, kind: output, shape index: {0}]
  %s3 = inlined_call_operand.vmem [shape: f32[1,1,128], index: 3, kind: output, shape index: {1}]
  %4 = xla_tuple %s2, %s3
  %s5 = sld [smem:[#allocation0]]
  $region30: #{cbow_forward.1} parent=0
    _
  %s7 = ssub.s32 1, %s5
  %s8 = scalar_select 0, %s7, %s5
  $region1: #{cbow_forward.1} parent=0
    #allocation2 [shape = 'u8[524288]{0}', space=vmem, size = 0x80000, scoped, tag = 'input window, operand 1, single buffered']
    #allocation3 [shape = 's32[1]{0}', space=sflag, size = 0x4, scoped, tag = 'scoped memory for cbow_forward.1']
    %9 = vsyncpa [#allocation3], 0
    // Predicated region
    $region2: #{cbow_forward.1} parent=1 // pred_check
      _
    $region3: #{cbow_forward.1} parent=1 // pred_check_branch
      %11 = sbr.rel (0) target = $region5
    $region4: #{cbow_forward.1} parent=1 // pred_region
      _
    $region5: #{cbow_forward.1} parent=1 // pred_fallthru
      _
    // Predicated region
    $region6: #{cbow_forward.1} parent=1 // pred_check
      _
    $region7: #{cbow_forward.1} parent=1 // pred_check_branch
      %13 = sbr.rel (0) target = $region9
    $region8: #{cbow_forward.1} parent=1 // pred_region
      %s15 = ssub.s32 16384, 16384
      %16 = vsyncadd [#allocation3], %s15
      %s17 = sshll.u32 [#allocation2], 4
      %s18 = int_to_ptr.vmem [resolvable:$true] %s17
      %23 = dma.hbm_to_vmem [thread:$0]  %s1, 16384, %s18, [#allocation3], 128, 128, 8
    $region9: #{cbow_forward.1} parent=1 // pred_fallthru
      _
    // Predicated region
    $region10: #{cbow_forward.1} parent=1 // pred_check
      _
    $region11: #{cbow_forward.1} parent=1 // pred_check_branch
      %25 = sbr.rel (0) target = $region13
    $region12: #{cbow_forward.1} parent=1 // pred_region
      %26 = dma.done [#allocation3], 16384
    $region13: #{cbow_forward.1} parent=1 // pred_fallthru
      _
    %v27 = vld [vmem:[%s0] sm:$0x1]
    %v28 = vld [vmem:[#allocation2] sm:$0xff]
    %v29 = vld [vmem:[#allocation2 + $0x8] sm:$0xff]
    %v30 = vld [vmem:[#allocation2 + $0x10] sm:$0xff]
    %v31 = vld [vmem:[#allocation2 + $0x18] sm:$0xff]
    %v32 = vld [vmem:[#allocation2 + $0x20] sm:$0xff]
    %v33 = vld [vmem:[#allocation2 + $0x28] sm:$0xff]
    %v34 = vld [vmem:[#allocation2 + $0x30] sm:$0xff]
    %v35 = vld [vmem:[#allocation2 + $0x38] sm:$0xff]
    %v36 = vld [vmem:[#allocation2 + $0x40] sm:$0xff]
    %v37 = vld [vmem:[#allocation2 + $0x48] sm:$0xff]
    %v38 = vld [vmem:[#allocation2 + $0x50] sm:$0xff]
    %v39 = vld [vmem:[#allocation2 + $0x58] sm:$0xff]
    %v40 = vld [vmem:[#allocation2 + $0x60] sm:$0xff]
    %v41 = vld [vmem:[#allocation2 + $0x68] sm:$0xff]
    %v42 = vld [vmem:[#allocation2 + $0x70] sm:$0xff]
    %v43 = vld [vmem:[#allocation2 + $0x78] sm:$0xff]
    %v44 = vld [vmem:[#allocation2 + $0x80] sm:$0xff]
    %v45 = vld [vmem:[#allocation2 + $0x88] sm:$0xff]
    %v46 = vld [vmem:[#allocation2 + $0x90] sm:$0xff]
    %v47 = vld [vmem:[#allocation2 + $0x98] sm:$0xff]
    %v48 = vld [vmem:[#allocation2 + $0xa0] sm:$0xff]
    %v49 = vld [vmem:[#allocation2 + $0xa8] sm:$0xff]
    %v50 = vld [vmem:[#allocation2 + $0xb0] sm:$0xff]
    %v51 = vld [vmem:[#allocation2 + $0xb8] sm:$0xff]
    %v52 = vld [vmem:[#allocation2 + $0xc0] sm:$0xff]
    %v53 = vld [vmem:[#allocation2 + $0xc8] sm:$0xff]
    %v54 = vld [vmem:[#allocation2 + $0xd0] sm:$0xff]
    %v55 = vld [vmem:[#allocation2 + $0xd8] sm:$0xff]
    %v56 = vld [vmem:[#allocation2 + $0xe0] sm:$0xff]
    %v57 = vld [vmem:[#allocation2 + $0xe8] sm:$0xff]
    %v58 = vld [vmem:[#allocation2 + $0xf0] sm:$0xff]
    %v59 = vld [vmem:[#allocation2 + $0xf8] sm:$0xff]
    %v60 = vld [vmem:[#allocation2 + $0x100] sm:$0xff]
    %v61 = vld [vmem:[#allocation2 + $0x108] sm:$0xff]
    %v62 = vld [vmem:[#allocation2 + $0x110] sm:$0xff]
    %v63 = vld [vmem:[#allocation2 + $0x118] sm:$0xff]
    %v64 = vld [vmem:[#allocation2 + $0x120] sm:$0xff]
    %v65 = vld [vmem:[#allocation2 + $0x128] sm:$0xff]
    %v66 = vld [vmem:[#allocation2 + $0x130] sm:$0xff]
    %v67 = vld [vmem:[#allocation2 + $0x138] sm:$0xff]
    %v68 = vld [vmem:[#allocation2 + $0x140] sm:$0xff]
    %v69 = vld [vmem:[#allocation2 + $0x148] sm:$0xff]
    %v70 = vld [vmem:[#allocation2 + $0x150] sm:$0xff]
    %v71 = vld [vmem:[#allocation2 + $0x158] sm:$0xff]
    %v72 = vld [vmem:[#allocation2 + $0x160] sm:$0xff]
    %v73 = vld [vmem:[#allocation2 + $0x168] sm:$0xff]
    %v74 = vld [vmem:[#allocation2 + $0x170] sm:$0xff]
    %v75 = vld [vmem:[#allocation2 + $0x178] sm:$0xff]
    %v76 = vld [vmem:[#allocation2 + $0x180] sm:$0xff]
    %v77 = vld [vmem:[#allocation2 + $0x188] sm:$0xff]
    %v78 = vld [vmem:[#allocation2 + $0x190] sm:$0xff]
    %v79 = vld [vmem:[#allocation2 + $0x198] sm:$0xff]
    %v80 = vld [vmem:[#allocation2 + $0x1a0] sm:$0xff]
    %v81 = vld [vmem:[#allocation2 + $0x1a8] sm:$0xff]
    %v82 = vld [vmem:[#allocation2 + $0x1b0] sm:$0xff]
    %v83 = vld [vmem:[#allocation2 + $0x1b8] sm:$0xff]
    %v84 = vld [vmem:[#allocation2 + $0x1c0] sm:$0xff]
    %v85 = vld [vmem:[#allocation2 + $0x1c8] sm:$0xff]
    %v86 = vld [vmem:[#allocation2 + $0x1d0] sm:$0xff]
    %v87 = vld [vmem:[#allocation2 + $0x1d8] sm:$0xff]
    %v88 = vld [vmem:[#allocation2 + $0x1e0] sm:$0xff]
    %v89 = vld [vmem:[#allocation2 + $0x1e8] sm:$0xff]
    %v90 = vld [vmem:[#allocation2 + $0x1f0] sm:$0xff]
    %v91 = vld [vmem:[#allocation2 + $0x1f8] sm:$0xff]
    %v92 = vld [vmem:[#allocation2 + $0x200] sm:$0xff]
    %v93 = vld [vmem:[#allocation2 + $0x208] sm:$0xff]
    %v94 = vld [vmem:[#allocation2 + $0x210] sm:$0xff]
    %v95 = vld [vmem:[#allocation2 + $0x218] sm:$0xff]
    %v96 = vld [vmem:[#allocation2 + $0x220] sm:$0xff]
    %v97 = vld [vmem:[#allocation2 + $0x228] sm:$0xff]
    %v98 = vld [vmem:[#allocation2 + $0x230] sm:$0xff]
    %v99 = vld [vmem:[#allocation2 + $0x238] sm:$0xff]
    %v100 = vld [vmem:[#allocation2 + $0x240] sm:$0xff]
    %v101 = vld [vmem:[#allocation2 + $0x248] sm:$0xff]
    %v102 = vld [vmem:[#allocation2 + $0x250] sm:$0xff]
    %v103 = vld [vmem:[#allocation2 + $0x258] sm:$0xff]
    %v104 = vld [vmem:[#allocation2 + $0x260] sm:$0xff]
    %v105 = vld [vmem:[#allocation2 + $0x268] sm:$0xff]
    %v106 = vld [vmem:[#allocation2 + $0x270] sm:$0xff]
    %v107 = vld [vmem:[#allocation2 + $0x278] sm:$0xff]
    %v108 = vld [vmem:[#allocation2 + $0x280] sm:$0xff]
    %v109 = vld [vmem:[#allocation2 + $0x288] sm:$0xff]
    %v110 = vld [vmem:[#allocation2 + $0x290] sm:$0xff]
    %v111 = vld [vmem:[#allocation2 + $0x298] sm:$0xff]
    %v112 = vld [vmem:[#allocation2 + $0x2a0] sm:$0xff]
    %v113 = vld [vmem:[#allocation2 + $0x2a8] sm:$0xff]
    %v114 = vld [vmem:[#allocation2 + $0x2b0] sm:$0xff]
    %v115 = vld [vmem:[#allocation2 + $0x2b8] sm:$0xff]
    %v116 = vld [vmem:[#allocation2 + $0x2c0] sm:$0xff]
    %v117 = vld [vmem:[#allocation2 + $0x2c8] sm:$0xff]
    %v118 = vld [vmem:[#allocation2 + $0x2d0] sm:$0xff]
    %v119 = vld [vmem:[#allocation2 + $0x2d8] sm:$0xff]
    %v120 = vld [vmem:[#allocation2 + $0x2e0] sm:$0xff]
    %v121 = vld [vmem:[#allocation2 + $0x2e8] sm:$0xff]
    %v122 = vld [vmem:[#allocation2 + $0x2f0] sm:$0xff]
    %v123 = vld [vmem:[#allocation2 + $0x2f8] sm:$0xff]
    %v124 = vld [vmem:[#allocation2 + $0x300] sm:$0xff]
    %v125 = vld [vmem:[#allocation2 + $0x308] sm:$0xff]
    %v126 = vld [vmem:[#allocation2 + $0x310] sm:$0xff]
    %v127 = vld [vmem:[#allocation2 + $0x318] sm:$0xff]
    %v128 = vld [vmem:[#allocation2 + $0x320] sm:$0xff]
    %v129 = vld [vmem:[#allocation2 + $0x328] sm:$0xff]
    %v130 = vld [vmem:[#allocation2 + $0x330] sm:$0xff]
    %v131 = vld [vmem:[#allocation2 + $0x338] sm:$0xff]
    %v132 = vld [vmem:[#allocation2 + $0x340] sm:$0xff]
    %v133 = vld [vmem:[#allocation2 + $0x348] sm:$0xff]
    %v134 = vld [vmem:[#allocation2 + $0x350] sm:$0xff]
    %v135 = vld [vmem:[#allocation2 + $0x358] sm:$0xff]
    %v136 = vld [vmem:[#allocation2 + $0x360] sm:$0xff]
    %v137 = vld [vmem:[#allocation2 + $0x368] sm:$0xff]
    %v138 = vld [vmem:[#allocation2 + $0x370] sm:$0xff]
    %v139 = vld [vmem:[#allocation2 + $0x378] sm:$0xff]
    %v140 = vld [vmem:[#allocation2 + $0x380] sm:$0xff]
    %v141 = vld [vmem:[#allocation2 + $0x388] sm:$0xff]
    %v142 = vld [vmem:[#allocation2 + $0x390] sm:$0xff]
    %v143 = vld [vmem:[#allocation2 + $0x398] sm:$0xff]
    %v144 = vld [vmem:[#allocation2 + $0x3a0] sm:$0xff]
    %v145 = vld [vmem:[#allocation2 + $0x3a8] sm:$0xff]
    %v146 = vld [vmem:[#allocation2 + $0x3b0] sm:$0xff]
    %v147 = vld [vmem:[#allocation2 + $0x3b8] sm:$0xff]
    %v148 = vld [vmem:[#allocation2 + $0x3c0] sm:$0xff]
    %v149 = vld [vmem:[#allocation2 + $0x3c8] sm:$0xff]
    %v150 = vld [vmem:[#allocation2 + $0x3d0] sm:$0xff]
    %v151 = vld [vmem:[#allocation2 + $0x3d8] sm:$0xff]
    %v152 = vld [vmem:[#allocation2 + $0x3e0] sm:$0xff]
    %v153 = vld [vmem:[#allocation2 + $0x3e8] sm:$0xff]
    %v154 = vld [vmem:[#allocation2 + $0x3f0] sm:$0xff]
    %v155 = vld [vmem:[#allocation2 + $0x3f8] sm:$0xff]
    %156 = vmatprep.subr.mxu0 0.0
    %157 = vmatpush1.xpose.msra.mxu0 %v28
    %158 = vmatprep.subr.mxu0 0.0
    %159 = vmatpush1.xpose.msra.mxu0 %v29
    %160 = vmatprep.subr.mxu0 0.0
    %161 = vmatpush1.xpose.msra.mxu0 %v30
    %162 = vmatprep.subr.mxu0 0.0
    %163 = vmatpush1.xpose.msra.mxu0 %v31
    %164 = vmatprep.subr.mxu0 0.0
    %165 = vmatpush1.xpose.msra.mxu0 %v32
    %166 = vmatprep.subr.mxu0 0.0
    %167 = vmatpush1.xpose.msra.mxu0 %v33
    %168 = vmatprep.subr.mxu0 0.0
    %169 = vmatpush1.xpose.msra.mxu0 %v34
    %170 = vmatprep.subr.mxu0 0.0
    %171 = vmatpush1.xpose.msra.mxu0 %v35
    %172 = vmatprep.subr.mxu0 0.0
    %173 = vmatpush1.xpose.msra.mxu0 %v36
    %174 = vmatprep.subr.mxu0 0.0
    %175 = vmatpush1.xpose.msra.mxu0 %v37
    %176 = vmatprep.subr.mxu0 0.0
    %177 = vmatpush1.xpose.msra.mxu0 %v38
    %178 = vmatprep.subr.mxu0 0.0
    %179 = vmatpush1.xpose.msra.mxu0 %v39
    %180 = vmatprep.subr.mxu0 0.0
    %181 = vmatpush1.xpose.msra.mxu0 %v40
    %182 = vmatprep.subr.mxu0 0.0
    %183 = vmatpush1.xpose.msra.mxu0 %v41
    %184 = vmatprep.subr.mxu0 0.0
    %185 = vmatpush1.xpose.msra.mxu0 %v42
    %186 = vmatprep.subr.mxu0 0.0
    %187 = vmatpush1.xpose.msra.mxu0 %v43
    %188 = vmatprep.subr.mxu0 0.0
    %189 = vmatpush1.xpose.msra.mxu0 %v44
    %190 = vmatprep.subr.mxu0 0.0
    %191 = vmatpush1.xpose.msra.mxu0 %v45
    %192 = vmatprep.subr.mxu0 0.0
    %193 = vmatpush1.xpose.msra.mxu0 %v46
    %194 = vmatprep.subr.mxu0 0.0
    %195 = vmatpush1.xpose.msra.mxu0 %v47
    %196 = vmatprep.subr.mxu0 0.0
    %197 = vmatpush1.xpose.msra.mxu0 %v48
    %198 = vmatprep.subr.mxu0 0.0
    %199 = vmatpush1.xpose.msra.mxu0 %v49
    %200 = vmatprep.subr.mxu0 0.0
    %201 = vmatpush1.xpose.msra.mxu0 %v50
    %202 = vmatprep.subr.mxu0 0.0
    %203 = vmatpush1.xpose.msra.mxu0 %v51
    %204 = vmatprep.subr.mxu0 0.0
    %205 = vmatpush1.xpose.msra.mxu0 %v52
    %206 = vmatprep.subr.mxu0 0.0
    %207 = vmatpush1.xpose.msra.mxu0 %v53
    %208 = vmatprep.subr.mxu0 0.0
    %209 = vmatpush1.xpose.msra.mxu0 %v54
    %210 = vmatprep.subr.mxu0 0.0
    %211 = vmatpush1.xpose.msra.mxu0 %v55
    %212 = vmatprep.subr.mxu0 0.0
    %213 = vmatpush1.xpose.msra.mxu0 %v56
    %214 = vmatprep.subr.mxu0 0.0
    %215 = vmatpush1.xpose.msra.mxu0 %v57
    %216 = vmatprep.subr.mxu0 0.0
    %217 = vmatpush1.xpose.msra.mxu0 %v58
    %218 = vmatprep.subr.mxu0 0.0
    %219 = vmatpush1.xpose.msra.mxu0 %v59
    %220 = vmatprep.mubr.f32.mxu0 0.0
    %221 = vmatmul.mubr.f32.gmra.mrb[0].mxu0 %v27
    %v222 = vpop.f32.mrb[0].mxu0
    %v223 = vadd.f32 0.0, %v222
    %v224 = vpop.f32.mrb[0].mxu0
    %v225 = vadd.f32 0.0, %v224
    %226 = vdwg.mxu0
    %227 = vmatprep.subr.mxu0 0.0
    %228 = vmatpush1.xpose.msra.mxu0 %v60
    %229 = vmatprep.subr.mxu0 0.0
    %230 = vmatpush1.xpose.msra.mxu0 %v61
    %231 = vmatprep.subr.mxu0 0.0
    %232 = vmatpush1.xpose.msra.mxu0 %v62
    %233 = vmatprep.subr.mxu0 0.0
    %234 = vmatpush1.xpose.msra.mxu0 %v63
    %235 = vmatprep.subr.mxu0 0.0
    %236 = vmatpush1.xpose.msra.mxu0 %v64
    %237 = vmatprep.subr.mxu0 0.0
    %238 = vmatpush1.xpose.msra.mxu0 %v65
    %239 = vmatprep.subr.mxu0 0.0
    %240 = vmatpush1.xpose.msra.mxu0 %v66
    %241 = vmatprep.subr.mxu0 0.0
    %242 = vmatpush1.xpose.msra.mxu0 %v67
    %243 = vmatprep.subr.mxu0 0.0
    %244 = vmatpush1.xpose.msra.mxu0 %v68
    %245 = vmatprep.subr.mxu0 0.0
    %246 = vmatpush1.xpose.msra.mxu0 %v69
    %247 = vmatprep.subr.mxu0 0.0
    %248 = vmatpush1.xpose.msra.mxu0 %v70
    %249 = vmatprep.subr.mxu0 0.0
    %250 = vmatpush1.xpose.msra.mxu0 %v71
    %251 = vmatprep.subr.mxu0 0.0
    %252 = vmatpush1.xpose.msra.mxu0 %v72
    %253 = vmatprep.subr.mxu0 0.0
    %254 = vmatpush1.xpose.msra.mxu0 %v73
    %255 = vmatprep.subr.mxu0 0.0
    %256 = vmatpush1.xpose.msra.mxu0 %v74
    %257 = vmatprep.subr.mxu0 0.0
    %258 = vmatpush1.xpose.msra.mxu0 %v75
    %259 = vmatprep.subr.mxu0 0.0
    %260 = vmatpush1.xpose.msra.mxu0 %v76
    %261 = vmatprep.subr.mxu0 0.0
    %262 = vmatpush1.xpose.msra.mxu0 %v77
    %263 = vmatprep.subr.mxu0 0.0
    %264 = vmatpush1.xpose.msra.mxu0 %v78
    %265 = vmatprep.subr.mxu0 0.0
    %266 = vmatpush1.xpose.msra.mxu0 %v79
    %267 = vmatprep.subr.mxu0 0.0
    %268 = vmatpush1.xpose.msra.mxu0 %v80
    %269 = vmatprep.subr.mxu0 0.0
    %270 = vmatpush1.xpose.msra.mxu0 %v81
    %271 = vmatprep.subr.mxu0 0.0
    %272 = vmatpush1.xpose.msra.mxu0 %v82
    %273 = vmatprep.subr.mxu0 0.0
    %274 = vmatpush1.xpose.msra.mxu0 %v83
    %275 = vmatprep.subr.mxu0 0.0
    %276 = vmatpush1.xpose.msra.mxu0 %v84
    %277 = vmatprep.subr.mxu0 0.0
    %278 = vmatpush1.xpose.msra.mxu0 %v85
    %279 = vmatprep.subr.mxu0 0.0
    %280 = vmatpush1.xpose.msra.mxu0 %v86
    %281 = vmatprep.subr.mxu0 0.0
    %282 = vmatpush1.xpose.msra.mxu0 %v87
    %283 = vmatprep.subr.mxu0 0.0
    %284 = vmatpush1.xpose.msra.mxu0 %v88
    %285 = vmatprep.subr.mxu0 0.0
    %286 = vmatpush1.xpose.msra.mxu0 %v89
    %287 = vmatprep.subr.mxu0 0.0
    %288 = vmatpush1.xpose.msra.mxu0 %v90
    %289 = vmatprep.subr.mxu0 0.0
    %290 = vmatpush1.xpose.msra.mxu0 %v91
    %291 = vmatprep.mubr.f32.mxu0 0.0
    %292 = vmatmul.mubr.f32.gmra.mrb[0].mxu0 %v27
    %v293 = vpop.f32.mrb[0].mxu0
    %v294 = vadd.f32 0.0, %v293
    %v295 = vpop.f32.mrb[0].mxu0
    %v296 = vadd.f32 0.0, %v295
    %297 = vdwg.mxu0
    %298 = vmatprep.subr.mxu0 0.0
    %299 = vmatpush1.xpose.msra.mxu0 %v92
    %300 = vmatprep.subr.mxu0 0.0
    %301 = vmatpush1.xpose.msra.mxu0 %v93
    %302 = vmatprep.subr.mxu0 0.0
    %303 = vmatpush1.xpose.msra.mxu0 %v94
    %304 = vmatprep.subr.mxu0 0.0
    %305 = vmatpush1.xpose.msra.mxu0 %v95
    %306 = vmatprep.subr.mxu0 0.0
    %307 = vmatpush1.xpose.msra.mxu0 %v96
    %308 = vmatprep.subr.mxu0 0.0
    %309 = vmatpush1.xpose.msra.mxu0 %v97
    %310 = vmatprep.subr.mxu0 0.0
    %311 = vmatpush1.xpose.msra.mxu0 %v98
    %312 = vmatprep.subr.mxu0 0.0
    %313 = vmatpush1.xpose.msra.mxu0 %v99
    %314 = vmatprep.subr.mxu0 0.0
    %315 = vmatpush1.xpose.msra.mxu0 %v100
    %316 = vmatprep.subr.mxu0 0.0
    %317 = vmatpush1.xpose.msra.mxu0 %v101
    %318 = vmatprep.subr.mxu0 0.0
    %319 = vmatpush1.xpose.msra.mxu0 %v102
    %320 = vmatprep.subr.mxu0 0.0
    %321 = vmatpush1.xpose.msra.mxu0 %v103
    %322 = vmatprep.subr.mxu0 0.0
    %323 = vmatpush1.xpose.msra.mxu0 %v104
    %324 = vmatprep.subr.mxu0 0.0
    %325 = vmatpush1.xpose.msra.mxu0 %v105
    %326 = vmatprep.subr.mxu0 0.0
    %327 = vmatpush1.xpose.msra.mxu0 %v106
    %328 = vmatprep.subr.mxu0 0.0
    %329 = vmatpush1.xpose.msra.mxu0 %v107
    %330 = vmatprep.subr.mxu0 0.0
    %331 = vmatpush1.xpose.msra.mxu0 %v108
    %332 = vmatprep.subr.mxu0 0.0
    %333 = vmatpush1.xpose.msra.mxu0 %v109
    %334 = vmatprep.subr.mxu0 0.0
    %335 = vmatpush1.xpose.msra.mxu0 %v110
    %336 = vmatprep.subr.mxu0 0.0
    %337 = vmatpush1.xpose.msra.mxu0 %v111
    %338 = vmatprep.subr.mxu0 0.0
    %339 = vmatpush1.xpose.msra.mxu0 %v112
    %340 = vmatprep.subr.mxu0 0.0
    %341 = vmatpush1.xpose.msra.mxu0 %v113
    %342 = vmatprep.subr.mxu0 0.0
    %343 = vmatpush1.xpose.msra.mxu0 %v114
    %344 = vmatprep.subr.mxu0 0.0
    %345 = vmatpush1.xpose.msra.mxu0 %v115
    %346 = vmatprep.subr.mxu0 0.0
    %347 = vmatpush1.xpose.msra.mxu0 %v116
    %348 = vmatprep.subr.mxu0 0.0
    %349 = vmatpush1.xpose.msra.mxu0 %v117
    %350 = vmatprep.subr.mxu0 0.0
    %351 = vmatpush1.xpose.msra.mxu0 %v118
    %352 = vmatprep.subr.mxu0 0.0
    %353 = vmatpush1.xpose.msra.mxu0 %v119
    %354 = vmatprep.subr.mxu0 0.0
    %355 = vmatpush1.xpose.msra.mxu0 %v120
    %356 = vmatprep.subr.mxu0 0.0
    %357 = vmatpush1.xpose.msra.mxu0 %v121
    %358 = vmatprep.subr.mxu0 0.0
    %359 = vmatpush1.xpose.msra.mxu0 %v122
    %360 = vmatprep.subr.mxu0 0.0
    %361 = vmatpush1.xpose.msra.mxu0 %v123
    %362 = vmatprep.mubr.f32.mxu0 0.0
    %363 = vmatmul.mubr.f32.gmra.mrb[0].mxu0 %v27
    %v364 = vpop.f32.mrb[0].mxu0
    %v365 = vadd.f32 0.0, %v364
    %v366 = vpop.f32.mrb[0].mxu0
    %v367 = vadd.f32 0.0, %v366
    %368 = vdwg.mxu0
    %369 = vmatprep.subr.mxu0 0.0
    %370 = vmatpush1.xpose.msra.mxu0 %v124
    %371 = vmatprep.subr.mxu0 0.0
    %372 = vmatpush1.xpose.msra.mxu0 %v125
    %373 = vmatprep.subr.mxu0 0.0
    %374 = vmatpush1.xpose.msra.mxu0 %v126
    %375 = vmatprep.subr.mxu0 0.0
    %376 = vmatpush1.xpose.msra.mxu0 %v127
    %377 = vmatprep.subr.mxu0 0.0
    %378 = vmatpush1.xpose.msra.mxu0 %v128
    %379 = vmatprep.subr.mxu0 0.0
    %380 = vmatpush1.xpose.msra.mxu0 %v129
    %381 = vmatprep.subr.mxu0 0.0
    %382 = vmatpush1.xpose.msra.mxu0 %v130
    %383 = vmatprep.subr.mxu0 0.0
    %384 = vmatpush1.xpose.msra.mxu0 %v131
    %385 = vmatprep.subr.mxu0 0.0
    %386 = vmatpush1.xpose.msra.mxu0 %v132
    %387 = vmatprep.subr.mxu0 0.0
    %388 = vmatpush1.xpose.msra.mxu0 %v133
    %389 = vmatprep.subr.mxu0 0.0
    %390 = vmatpush1.xpose.msra.mxu0 %v134
    %391 = vmatprep.subr.mxu0 0.0
    %392 = vmatpush1.xpose.msra.mxu0 %v135
    %393 = vmatprep.subr.mxu0 0.0
    %394 = vmatpush1.xpose.msra.mxu0 %v136
    %395 = vmatprep.subr.mxu0 0.0
    %396 = vmatpush1.xpose.msra.mxu0 %v137
    %397 = vmatprep.subr.mxu0 0.0
    %398 = vmatpush1.xpose.msra.mxu0 %v138
    %399 = vmatprep.subr.mxu0 0.0
    %400 = vmatpush1.xpose.msra.mxu0 %v139
    %401 = vmatprep.subr.mxu0 0.0
    %402 = vmatpush1.xpose.msra.mxu0 %v140
    %403 = vmatprep.subr.mxu0 0.0
    %404 = vmatpush1.xpose.msra.mxu0 %v141
    %405 = vmatprep.subr.mxu0 0.0
    %406 = vmatpush1.xpose.msra.mxu0 %v142
    %407 = vmatprep.subr.mxu0 0.0
    %408 = vmatpush1.xpose.msra.mxu0 %v143
    %409 = vmatprep.subr.mxu0 0.0
    %410 = vmatpush1.xpose.msra.mxu0 %v144
    %411 = vmatprep.subr.mxu0 0.0
    %412 = vmatpush1.xpose.msra.mxu0 %v145
    %413 = vmatprep.subr.mxu0 0.0
    %414 = vmatpush1.xpose.msra.mxu0 %v146
    %415 = vmatprep.subr.mxu0 0.0
    %416 = vmatpush1.xpose.msra.mxu0 %v147
    %417 = vmatprep.subr.mxu0 0.0
    %418 = vmatpush1.xpose.msra.mxu0 %v148
    %419 = vmatprep.subr.mxu0 0.0
    %420 = vmatpush1.xpose.msra.mxu0 %v149
    %421 = vmatprep.subr.mxu0 0.0
    %422 = vmatpush1.xpose.msra.mxu0 %v150
    %423 = vmatprep.subr.mxu0 0.0
    %424 = vmatpush1.xpose.msra.mxu0 %v151
    %425 = vmatprep.subr.mxu0 0.0
    %426 = vmatpush1.xpose.msra.mxu0 %v152
    %427 = vmatprep.subr.mxu0 0.0
    %428 = vmatpush1.xpose.msra.mxu0 %v153
    %429 = vmatprep.subr.mxu0 0.0
    %430 = vmatpush1.xpose.msra.mxu0 %v154
    %431 = vmatprep.subr.mxu0 0.0
    %432 = vmatpush1.xpose.msra.mxu0 %v155
    %433 = vmatprep.mubr.f32.mxu0 0.0
    %434 = vmatmul.mubr.f32.gmra.mrb[0].mxu0 %v27
    %v435 = vpop.f32.mrb[0].mxu0
    %v436 = vadd.f32 0.0, %v435
    %v437 = vpop.f32.mrb[0].mxu0
    %v438 = vadd.f32 0.0, %v437
    %439 = vdwg.mxu0
    %s440 = smul.u32 0, 1024
    %v441 = vlaneseq
    %v442 = vand.u32 %v441, 127
    %v443 = vadd.s32 %v442, 128
    %v444 = vadd.s32 %v442, 256
    %v445 = vadd.s32 %v442, 384
    %v446 = vadd.s32 %v442, 512
    %v447 = vadd.s32 %v442, 640
    %v448 = vadd.s32 %v442, 768
    %v449 = vadd.s32 %v442, 896
    %v450 = vstv %s440
    %v451 = vadd.s32 %v450, %v442
    %v452 = vadd.s32 %v450, %v443
    %v453 = vadd.s32 %v450, %v444
    %v454 = vadd.s32 %v450, %v445
    %v455 = vadd.s32 %v450, %v446
    %v456 = vadd.s32 %v450, %v447
    %v457 = vadd.s32 %v450, %v448
    %v458 = vadd.s32 %v450, %v449
    %vm459 = vcmp.lt.s32.totalorder %v451, 1000
    %vm460 = vcmp.lt.s32.totalorder %v452, 1000
    %vm461 = vcmp.lt.s32.totalorder %v453, 1000
    %vm462 = vcmp.lt.s32.totalorder %v454, 1000
    %vm463 = vcmp.lt.s32.totalorder %v455, 1000
    %vm464 = vcmp.lt.s32.totalorder %v456, 1000
    %vm465 = vcmp.lt.s32.totalorder %v457, 1000
    %vm466 = vcmp.lt.s32.totalorder %v458, 1000
    %v467 = vsel %vm459, %v223, -inf
    %v468 = vsel %vm460, %v225, -inf
    %v469 = vsel %vm461, %v294, -inf
    %v470 = vsel %vm462, %v296, -inf
    %v471 = vsel %vm463, %v365, -inf
    %v472 = vsel %vm464, %v367, -inf
    %v473 = vsel %vm465, %v436, -inf
    %v474 = vsel %vm466, %v438, -inf
    %v483 = vcombine.low %v467, %v468
    %v484 = vcombine.low %v469, %v470
    %v485 = vcombine.low %v471, %v472
    %v486 = vcombine.low %v473, %v474
    %v488 = vunpack.c.l.s4 1966171168
    %v489 = vunpack.c.0.s8 %v488
    %v490 = vlaneseq
    %v491 = vshrl.u32 %v490, 7
    %v492 = vsub.s32 %v489, %v491
    %v493 = vrot.slane %v483, %v492
    %v495 = vunpack.c.l.s4 1966171168
    %v496 = vunpack.c.0.s8 %v495
    %v497 = vlaneseq
    %v498 = vshrl.u32 %v497, 7
    %v499 = vsub.s32 %v496, %v498
    %v500 = vrot.slane %v484, %v499
    %v502 = vunpack.c.l.s4 1966171168
    %v503 = vunpack.c.0.s8 %v502
    %v504 = vlaneseq
    %v505 = vshrl.u32 %v504, 7
    %v506 = vsub.s32 %v503, %v505
    %v507 = vrot.slane %v485, %v506
    %v509 = vunpack.c.l.s4 1966171168
    %v510 = vunpack.c.0.s8 %v509
    %v511 = vlaneseq
    %v512 = vshrl.u32 %v511, 7
    %v513 = vsub.s32 %v510, %v512
    %v514 = vrot.slane %v486, %v513
    %v515 = vcombine.low %v493, %v500
    %v516 = vcombine.low %v507, %v514
    %v518 = vunpack.c.l.s4 1966171168
    %v519 = vunpack.c.0.s8 %v518
    %v520 = vlaneseq
    %v521 = vshrl.u32 %v520, 7
    %v522 = vsub.s32 %v519, %v521
    %v523 = vrot.slane %v515, %v522
    %v525 = vunpack.c.l.s4 1966171168
    %v526 = vunpack.c.0.s8 %v525
    %v527 = vlaneseq
    %v528 = vshrl.u32 %v527, 7
    %v529 = vsub.s32 %v526, %v528
    %v530 = vrot.slane %v516, %v529
    %v531 = vcombine.low %v523, %v530
    %533 = vst [vmem:[%s2] sm:$0xff] %v531
    %vm534 = vcmask 1040384
    %v535 = vsel %vm534, %v467, -inf
    %v536 = vsel %vm534, %v468, -inf
    %v537 = vsel %vm534, %v469, -inf
    %v538 = vsel %vm534, %v470, -inf
    %v539 = vsel %vm534, %v471, -inf
    %v540 = vmax.f32 %v535, %v539
    %v541 = vsel %vm534, %v472, -inf
    %v542 = vmax.f32 %v536, %v541
    %v543 = vsel %vm534, %v473, -inf
    %v544 = vmax.f32 %v537, %v543
    %v545 = vsel %vm534, %v474, -inf
    %v546 = vmax.f32 %v538, %v545
    %v547 = vmax.f32 %v540, %v542
    %v548 = vmax.f32 %v544, %v546
    %v549 = vmax.f32 %v547, %v548
    %550 = vmax.xlane.f32.xlu0 %v549
    %v551 = vpop.xlane.xlu0 %550
    %v552 = vsub.f32 %v467, %v551
    %v553 = vsub.f32 %v468, %v551
    %v554 = vsub.f32 %v469, %v551
    %v555 = vsub.f32 %v470, %v551
    %v556 = vsub.f32 %v471, %v551
    %v557 = vsub.f32 %v472, %v551
    %v558 = vsub.f32 %v473, %v551
    %v559 = vsub.f32 %v474, %v551
    %v560 = vmul.f32 %v552, 1.442695
    %v561 = vpow.pop %v560
    %v562 = vmul.f32 %v553, 1.442695
    %v563 = vpow.pop %v562
    %v564 = vmul.f32 %v554, 1.442695
    %v565 = vpow.pop %v564
    %v566 = vmul.f32 %v555, 1.442695
    %v567 = vpow.pop %v566
    %v568 = vmul.f32 %v556, 1.442695
    %v569 = vpow.pop %v568
    %v570 = vmul.f32 %v557, 1.442695
    %v571 = vpow.pop %v570
    %v572 = vmul.f32 %v558, 1.442695
    %v573 = vpow.pop %v572
    %v574 = vmul.f32 %v559, 1.442695
    %v575 = vpow.pop %v574
    %v576 = vsel %vm534, %v561, 0.0
    %v577 = vsel %vm534, %v563, 0.0
    %v578 = vadd.f32 %v576, %v577
    %v579 = vsel %vm534, %v565, 0.0
    %v580 = vadd.f32 %v578, %v579
    %v581 = vsel %vm534, %v567, 0.0
    %v582 = vadd.f32 %v580, %v581
    %v583 = vsel %vm534, %v569, 0.0
    %v584 = vadd.f32 %v582, %v583
    %v585 = vsel %vm534, %v571, 0.0
    %v586 = vadd.f32 %v584, %v585
    %v587 = vsel %vm534, %v573, 0.0
    %v588 = vadd.f32 %v586, %v587
    %v589 = vsel %vm534, %v575, 0.0
    %v590 = vadd.f32 %v588, %v589
    %591 = vadd.xlane.f32.xlu0 %v590
    %v592 = vpop.xlane.xlu0 %591
    %v593 = vlog2.pop %v592
    %v594 = vmul.f32 %v593, 0.6931472
    %v595 = vadd.f32 %v551, %v594
    %596 = vst [vmem:[%s3] sm:$0x1] %v595
    // Predicated region
    $region14: #{cbow_forward.1} parent=1 // pred_check
      _
    $region15: #{cbow_forward.1} parent=1 // pred_check_branch
      %598 = sbr.rel (0) target = $region17
    $region16: #{cbow_forward.1} parent=1 // pred_region
      _
    $region17: #{cbow_forward.1} parent=1 // pred_fallthru
      _
    // Predicated region
    $region18: #{cbow_forward.1} parent=1 // pred_check
      _
    $region19: #{cbow_forward.1} parent=1 // pred_check_branch
      %600 = sbr.rel (0) target = $region21
    $region20: #{cbow_forward.1} parent=1 // pred_region
      _
    $region21: #{cbow_forward.1} parent=1 // pred_fallthru
      _
    // Predicated region
    $region22: #{cbow_forward.1} parent=1 // pred_check
      _
    $region23: #{cbow_forward.1} parent=1 // pred_check_branch
      %602 = sbr.rel (0) target = $region25
    $region24: #{cbow_forward.1} parent=1 // pred_region
      _
    $region25: #{cbow_forward.1} parent=1 // pred_fallthru
      _
    // Predicated region
    $region26: #{cbow_forward.1} parent=1 // pred_check
      _
    $region27: #{cbow_forward.1} parent=1 // pred_check_branch
      %604 = sbr.rel (0) target = $region29
    $region28: #{cbow_forward.1} parent=1 // pred_region
      _
    $region29: #{cbow_forward.1} parent=1 // pred_fallthru
      _
    %605 = vsyncpa [#allocation3], 1

</llo_original>
